<compile_context>
chip_gen: v5e
topology: v5e:2x2
jax: 0.10.0
libtpu: 0.0.40
codegen_flags: <defaults>
</compile_context>

<pallas_src>
import jax
import jax.numpy as jnp
from jax.experimental import pallas as pl
from jax.experimental.pallas import tpu as pltpu


def relu_conv1x1_kernel(x_ref, w_ref, o_ref):
    # x_ref: (N, C_in, HW)  w_ref: (C_out, C_in)  o_ref: (N, C_out, HW)
    w = w_ref[...]
    for n in range(x_ref.shape[0]):  # static, tiny (N=1 for this module)
        x = jnp.maximum(x_ref[n], 0.0)  # ReLU on the VPU (free slot)
        o_ref[n] = jnp.dot(
            w, x, preferred_element_type=jnp.float32
        ).astype(o_ref.dtype)


def relu_conv1x1(x_nchw, weight_oi):
    """x_nchw: (N, C_in, H, W) f32; weight_oi: (C_out, C_in) f32 (PyTorch layout)."""
    N, C_in, H, W = x_nchw.shape
    C_out = weight_oi.shape[0]
    HW = H * W

    # NCHW -> (N, C_in, H*W): a pure reshape, no data movement.
    x3d = x_nchw.reshape(N, C_in, HW)

    itemsize = jnp.dtype(x3d.dtype).itemsize
    cost = pl.CostEstimate(
        flops=2 * N * C_out * C_in * HW,
        transcendentals=0,
        bytes_accessed=(x3d.size + weight_oi.size + N * C_out * HW) * itemsize,
    )

    out3d = pl.pallas_call(
        relu_conv1x1_kernel,
        out_shape=jax.ShapeDtypeStruct((N, C_out, HW), x3d.dtype),
        in_specs=[
            pl.BlockSpec(memory_space=pltpu.MemorySpace.VMEM),
            pl.BlockSpec(memory_space=pltpu.MemorySpace.VMEM),
        ],
        out_specs=pl.BlockSpec(memory_space=pltpu.MemorySpace.VMEM),
        cost_estimate=cost,
    )(x3d, weight_oi)

    # (N, C_out, H*W) -> NCHW: again a pure reshape.
    return out3d.reshape(N, C_out, H, W)


if __name__ == "__main__":
    key = jax.random.PRNGKey(0)
    k_x, k_w = jax.random.split(key)

    # Shapes fixed by the module: input (1, 1472, 7, 7), Conv2d(1472, 128, 1x1, bias=False).
    N, C_in, H, W = 1, 1472, 7, 7
    C_out = 128

    x = jax.random.normal(k_x, (N, C_in, H, W), dtype=jnp.float32)
    # Deterministic Kaiming-uniform-like init for the 1x1 conv weight.
    fan_in = C_in  # 1x1 kernel
    bound = (1.0 / fan_in) ** 0.5
    weight = jax.random.uniform(
        k_w, (C_out, C_in), dtype=jnp.float32, minval=-bound, maxval=bound
    )

    out = relu_conv1x1(x, weight)
    jax.block_until_ready(out)

    # Reference: relu followed by 1x1 conv expressed as a matmul (no transposes needed).
    x3d = x.reshape(N, C_in, H * W)
    ref = jnp.einsum("oc,nck->nok", weight, jnp.maximum(x3d, 0.0)).reshape(
        N, C_out, H, W
    )
    assert out.shape == (N, C_out, H, W)
    assert jnp.allclose(out, ref, atol=1e-4, rtol=1e-4)

    print("KERNEL_OK")
</pallas_src>

<mosaic_0001>
module attributes {stable_mosaic.version = 11 : i64} {
  func.func @relu_conv1x1_kernel(%arg0: memref<1x1472x49xf32, #tpu.memory_space<vmem>>, %arg1: memref<128x1472xf32, #tpu.memory_space<vmem>>, %arg2: memref<1x128x49xf32, #tpu.memory_space<vmem>>) attributes {dimension_semantics = [], scalar_prefetch = 0 : i64, scratch_operands = 0 : i64, tpu.core_type = #tpu.core_type<tc>} {
    %c0 = arith.constant 0 : index
    %c0_0 = arith.constant 0 : index
    %0 = vector.load %arg1[%c0, %c0_0] : memref<128x1472xf32, #tpu.memory_space<vmem>>, vector<128x1472xf32>
    %c0_1 = arith.constant 0 : index
    %c0_2 = arith.constant 0 : index
    %c0_3 = arith.constant 0 : index
    %1 = vector.load %arg0[%c0_1, %c0_2, %c0_3] : memref<1x1472x49xf32, #tpu.memory_space<vmem>>, vector<1x1472x49xf32>
    %2 = vector.shape_cast %1 : vector<1x1472x49xf32> to vector<1472x49xf32>
    %cst = arith.constant 0.000000e+00 : f32
    %3 = vector.broadcast %cst : f32 to vector<1472x49xf32>
    %4 = arith.maximumf %2, %3 : vector<1472x49xf32>
    %cst_4 = arith.constant dense<0.000000e+00> : vector<128x49xf32>
    %5 = tpu.matmul %0, %4, %cst_4 {dimension_numbers = #tpu.dot_dimension_numbers<[1], [0], [0], [1], [0, 0, 1, 1], [], []>} : vector<128x1472xf32>, vector<1472x49xf32>, vector<128x49xf32> -> vector<128x49xf32>
    %c0_5 = arith.constant 0 : index
    %c0_6 = arith.constant 0 : index
    %c0_7 = arith.constant 0 : index
    %6 = vector.load %arg2[%c0_5, %c0_6, %c0_7] : memref<1x128x49xf32, #tpu.memory_space<vmem>>, vector<1x128x49xf32>
    %7 = vector.shape_cast %6 : vector<1x128x49xf32> to vector<128x49xf32>
    %8 = vector.shape_cast %5 : vector<128x49xf32> to vector<1x128x49xf32>
    tpu.vector_store %arg2[%c0_5, %c0_6, %c0_7], %8 {strides = array<i32>} : memref<1x128x49xf32, #tpu.memory_space<vmem>>, vector<1x128x49xf32>,
    return
  }
}

</mosaic_0001>

<llo_original>
// kernel: tpu_custom_call.1
$region0: #{tpu_custom_call.1}
  #allocation0 [shape = 'u32[]', space=smem, size = 0x4, offset = 0x4, fixed_abs, tag = 'smem constant byte address 0x4 - core index']
  #allocation1 [shape = 'u32[72,128]{1,0:T(1,128)}', space=vmem, size = 0x9000, scoped, tag = 'internal scratch']
  %s0 = inlined_call_operand.vmem [shape: f32[1,1472,49], index: 0, kind: input, shape index: {}]
  %s1 = inlined_call_operand.vmem [shape: f32[128,1472], index: 1, kind: input, shape index: {}]
  %s2 = inlined_call_operand.vmem [shape: f32[1,128,49], index: 2, kind: output, shape index: {}]
  %s3 = sld [smem:[#allocation0]]
  $region18: #{tpu_custom_call.1} parent=0
    _
  %s5 = ssub.s32 1, %s3
  %s6 = scalar_select 0, %s5, %s3
  // Predicated region
  $region2: #{tpu_custom_call.1} parent=0 // pred_check
    _
  $region3: #{tpu_custom_call.1} parent=0 // pred_check_branch
    %8 = sbr.rel (0) target = $region5
  $region4: #{tpu_custom_call.1} parent=0 // pred_region
    _
  $region5: #{tpu_custom_call.1} parent=0 // pred_fallthru
    _
  // Predicated region
  $region6: #{tpu_custom_call.1} parent=0 // pred_check
    _
  $region7: #{tpu_custom_call.1} parent=0 // pred_check_branch
    %10 = sbr.rel (0) target = $region9
  $region8: #{tpu_custom_call.1} parent=0 // pred_region
    _
  $region9: #{tpu_custom_call.1} parent=0 // pred_fallthru
    _
  %v11 = vld [vmem:[%s1] sm:$0xff]
  %v12 = vld [vmem:[%s1 + $0x8] sm:$0xff]
  %v13 = vld [vmem:[%s1 + $0x10] sm:$0xff]
  %v14 = vld [vmem:[%s1 + $0x18] sm:$0xff]
  %v15 = vld [vmem:[%s1 + $0x20] sm:$0xff]
  %v16 = vld [vmem:[%s1 + $0x28] sm:$0xff]
  %v17 = vld [vmem:[%s1 + $0x30] sm:$0xff]
  %v18 = vld [vmem:[%s1 + $0x38] sm:$0xff]
  %v19 = vld [vmem:[%s1 + $0x40] sm:$0xff]
  %v20 = vld [vmem:[%s1 + $0x48] sm:$0xff]
  %v21 = vld [vmem:[%s1 + $0x50] sm:$0xff]
  %v22 = vld [vmem:[%s1 + $0x58] sm:$0xff]
  %v23 = vld [vmem:[%s1 + $0x60] sm:$0xff]
  %v24 = vld [vmem:[%s1 + $0x68] sm:$0xff]
  %v25 = vld [vmem:[%s1 + $0x70] sm:$0xff]
  %v26 = vld [vmem:[%s1 + $0x78] sm:$0xff]
  %v27 = vld [vmem:[%s1 + $0x80] sm:$0xff]
  %v28 = vld [vmem:[%s1 + $0x88] sm:$0xff]
  %v29 = vld [vmem:[%s1 + $0x90] sm:$0xff]
  %v30 = vld [vmem:[%s1 + $0x98] sm:$0xff]
  %v31 = vld [vmem:[%s1 + $0xa0] sm:$0xff]
  %v32 = vld [vmem:[%s1 + $0xa8] sm:$0xff]
  %v33 = vld [vmem:[%s1 + $0xb0] sm:$0xff]
  %v34 = vld [vmem:[%s1 + $0xb8] sm:$0xff]
  %v35 = vld [vmem:[%s1 + $0xc0] sm:$0xff]
  %v36 = vld [vmem:[%s1 + $0xc8] sm:$0xff]
  %v37 = vld [vmem:[%s1 + $0xd0] sm:$0xff]
  %v38 = vld [vmem:[%s1 + $0xd8] sm:$0xff]
  %v39 = vld [vmem:[%s1 + $0xe0] sm:$0xff]
  %v40 = vld [vmem:[%s1 + $0xe8] sm:$0xff]
  %v41 = vld [vmem:[%s1 + $0xf0] sm:$0xff]
  %v42 = vld [vmem:[%s1 + $0xf8] sm:$0xff]
  %v43 = vld [vmem:[%s1 + $0x100] sm:$0xff]
  %v44 = vld [vmem:[%s1 + $0x108] sm:$0xff]
  %v45 = vld [vmem:[%s1 + $0x110] sm:$0xff]
  %v46 = vld [vmem:[%s1 + $0x118] sm:$0xff]
  %v47 = vld [vmem:[%s1 + $0x120] sm:$0xff]
  %v48 = vld [vmem:[%s1 + $0x128] sm:$0xff]
  %v49 = vld [vmem:[%s1 + $0x130] sm:$0xff]
  %v50 = vld [vmem:[%s1 + $0x138] sm:$0xff]
  %v51 = vld [vmem:[%s1 + $0x140] sm:$0xff]
  %v52 = vld [vmem:[%s1 + $0x148] sm:$0xff]
  %v53 = vld [vmem:[%s1 + $0x150] sm:$0xff]
  %v54 = vld [vmem:[%s1 + $0x158] sm:$0xff]
  %v55 = vld [vmem:[%s1 + $0x160] sm:$0xff]
  %v56 = vld [vmem:[%s1 + $0x168] sm:$0xff]
  %v57 = vld [vmem:[%s1 + $0x170] sm:$0xff]
  %v58 = vld [vmem:[%s1 + $0x178] sm:$0xff]
  %v59 = vld [vmem:[%s1 + $0x180] sm:$0xff]
  %v60 = vld [vmem:[%s1 + $0x188] sm:$0xff]
  %v61 = vld [vmem:[%s1 + $0x190] sm:$0xff]
  %v62 = vld [vmem:[%s1 + $0x198] sm:$0xff]
  %v63 = vld [vmem:[%s1 + $0x1a0] sm:$0xff]
  %v64 = vld [vmem:[%s1 + $0x1a8] sm:$0xff]
  %v65 = vld [vmem:[%s1 + $0x1b0] sm:$0xff]
  %v66 = vld [vmem:[%s1 + $0x1b8] sm:$0xff]
  %v67 = vld [vmem:[%s1 + $0x1c0] sm:$0xff]
  %v68 = vld [vmem:[%s1 + $0x1c8] sm:$0xff]
  %v69 = vld [vmem:[%s1 + $0x1d0] sm:$0xff]
  %v70 = vld [vmem:[%s1 + $0x1d8] sm:$0xff]
  %v71 = vld [vmem:[%s1 + $0x1e0] sm:$0xff]
  %v72 = vld [vmem:[%s1 + $0x1e8] sm:$0xff]
  %v73 = vld [vmem:[%s1 + $0x1f0] sm:$0xff]
  %v74 = vld [vmem:[%s1 + $0x1f8] sm:$0xff]
  %v75 = vld [vmem:[%s1 + $0x200] sm:$0xff]
  %v76 = vld [vmem:[%s1 + $0x208] sm:$0xff]
  %v77 = vld [vmem:[%s1 + $0x210] sm:$0xff]
  %v78 = vld [vmem:[%s1 + $0x218] sm:$0xff]
  %v79 = vld [vmem:[%s1 + $0x220] sm:$0xff]
  %v80 = vld [vmem:[%s1 + $0x228] sm:$0xff]
  %v81 = vld [vmem:[%s1 + $0x230] sm:$0xff]
  %v82 = vld [vmem:[%s1 + $0x238] sm:$0xff]
  %v83 = vld [vmem:[%s1 + $0x240] sm:$0xff]
  %v84 = vld [vmem:[%s1 + $0x248] sm:$0xff]
  %v85 = vld [vmem:[%s1 + $0x250] sm:$0xff]
  %v86 = vld [vmem:[%s1 + $0x258] sm:$0xff]
  %v87 = vld [vmem:[%s1 + $0x260] sm:$0xff]
  %v88 = vld [vmem:[%s1 + $0x268] sm:$0xff]
  %v89 = vld [vmem:[%s1 + $0x270] sm:$0xff]
  %v90 = vld [vmem:[%s1 + $0x278] sm:$0xff]
  %v91 = vld [vmem:[%s1 + $0x280] sm:$0xff]
  %v92 = vld [vmem:[%s1 + $0x288] sm:$0xff]
  %v93 = vld [vmem:[%s1 + $0x290] sm:$0xff]
  %v94 = vld [vmem:[%s1 + $0x298] sm:$0xff]
  %v95 = vld [vmem:[%s1 + $0x2a0] sm:$0xff]
  %v96 = vld [vmem:[%s1 + $0x2a8] sm:$0xff]
  %v97 = vld [vmem:[%s1 + $0x2b0] sm:$0xff]
  %v98 = vld [vmem:[%s1 + $0x2b8] sm:$0xff]
  %v99 = vld [vmem:[%s1 + $0x2c0] sm:$0xff]
  %v100 = vld [vmem:[%s1 + $0x2c8] sm:$0xff]
  %v101 = vld [vmem:[%s1 + $0x2d0] sm:$0xff]
  %v102 = vld [vmem:[%s1 + $0x2d8] sm:$0xff]
  %v103 = vld [vmem:[%s1 + $0x2e0] sm:$0xff]
  %v104 = vld [vmem:[%s1 + $0x2e8] sm:$0xff]
  %v105 = vld [vmem:[%s1 + $0x2f0] sm:$0xff]
  %v106 = vld [vmem:[%s1 + $0x2f8] sm:$0xff]
  %v107 = vld [vmem:[%s1 + $0x300] sm:$0xff]
  %v108 = vld [vmem:[%s1 + $0x308] sm:$0xff]
  %v109 = vld [vmem:[%s1 + $0x310] sm:$0xff]
  %v110 = vld [vmem:[%s1 + $0x318] sm:$0xff]
  %v111 = vld [vmem:[%s1 + $0x320] sm:$0xff]
  %v112 = vld [vmem:[%s1 + $0x328] sm:$0xff]
  %v113 = vld [vmem:[%s1 + $0x330] sm:$0xff]
  %v114 = vld [vmem:[%s1 + $0x338] sm:$0xff]
  %v115 = vld [vmem:[%s1 + $0x340] sm:$0xff]
  %v116 = vld [vmem:[%s1 + $0x348] sm:$0xff]
  %v117 = vld [vmem:[%s1 + $0x350] sm:$0xff]
  %v118 = vld [vmem:[%s1 + $0x358] sm:$0xff]
  %v119 = vld [vmem:[%s1 + $0x360] sm:$0xff]
  %v120 = vld [vmem:[%s1 + $0x368] sm:$0xff]
  %v121 = vld [vmem:[%s1 + $0x370] sm:$0xff]
  %v122 = vld [vmem:[%s1 + $0x378] sm:$0xff]
  %v123 = vld [vmem:[%s1 + $0x380] sm:$0xff]
  %v124 = vld [vmem:[%s1 + $0x388] sm:$0xff]
  %v125 = vld [vmem:[%s1 + $0x390] sm:$0xff]
  %v126 = vld [vmem:[%s1 + $0x398] sm:$0xff]
  %v127 = vld [vmem:[%s1 + $0x3a0] sm:$0xff]
  %v128 = vld [vmem:[%s1 + $0x3a8] sm:$0xff]
  %v129 = vld [vmem:[%s1 + $0x3b0] sm:$0xff]
  %v130 = vld [vmem:[%s1 + $0x3b8] sm:$0xff]
  %v131 = vld [vmem:[%s1 + $0x3c0] sm:$0xff]
  %v132 = vld [vmem:[%s1 + $0x3c8] sm:$0xff]
  %v133 = vld [vmem:[%s1 + $0x3d0] sm:$0xff]
  %v134 = vld [vmem:[%s1 + $0x3d8] sm:$0xff]
  %v135 = vld [vmem:[%s1 + $0x3e0] sm:$0xff]
  %v136 = vld [vmem:[%s1 + $0x3e8] sm:$0xff]
  %v137 = vld [vmem:[%s1 + $0x3f0] sm:$0xff]
  %v138 = vld [vmem:[%s1 + $0x3f8] sm:$0xff]
  %v139 = vld [vmem:[%s1 + $0x400] sm:$0xff]
  %v140 = vld [vmem:[%s1 + $0x408] sm:$0xff]
  %v141 = vld [vmem:[%s1 + $0x410] sm:$0xff]
  %v142 = vld [vmem:[%s1 + $0x418] sm:$0xff]
  %v143 = vld [vmem:[%s1 + $0x420] sm:$0xff]
  %v144 = vld [vmem:[%s1 + $0x428] sm:$0xff]
  %v145 = vld [vmem:[%s1 + $0x430] sm:$0xff]
  %v146 = vld [vmem:[%s1 + $0x438] sm:$0xff]
  %v147 = vld [vmem:[%s1 + $0x440] sm:$0xff]
  %v148 = vld [vmem:[%s1 + $0x448] sm:$0xff]
  %v149 = vld [vmem:[%s1 + $0x450] sm:$0xff]
  %v150 = vld [vmem:[%s1 + $0x458] sm:$0xff]
  %v151 = vld [vmem:[%s1 + $0x460] sm:$0xff]
  %v152 = vld [vmem:[%s1 + $0x468] sm:$0xff]
  %v153 = vld [vmem:[%s1 + $0x470] sm:$0xff]
  %v154 = vld [vmem:[%s1 + $0x478] sm:$0xff]
  %v155 = vld [vmem:[%s1 + $0x480] sm:$0xff]
  %v156 = vld [vmem:[%s1 + $0x488] sm:$0xff]
  %v157 = vld [vmem:[%s1 + $0x490] sm:$0xff]
  %v158 = vld [vmem:[%s1 + $0x498] sm:$0xff]
  %v159 = vld [vmem:[%s1 + $0x4a0] sm:$0xff]
  %v160 = vld [vmem:[%s1 + $0x4a8] sm:$0xff]
  %v161 = vld [vmem:[%s1 + $0x4b0] sm:$0xff]
  %v162 = vld [vmem:[%s1 + $0x4b8] sm:$0xff]
  %v163 = vld [vmem:[%s1 + $0x4c0] sm:$0xff]
  %v164 = vld [vmem:[%s1 + $0x4c8] sm:$0xff]
  %v165 = vld [vmem:[%s1 + $0x4d0] sm:$0xff]
  %v166 = vld [vmem:[%s1 + $0x4d8] sm:$0xff]
  %v167 = vld [vmem:[%s1 + $0x4e0] sm:$0xff]
  %v168 = vld [vmem:[%s1 + $0x4e8] sm:$0xff]
  %v169 = vld [vmem:[%s1 + $0x4f0] sm:$0xff]
  %v170 = vld [vmem:[%s1 + $0x4f8] sm:$0xff]
  %v171 = vld [vmem:[%s1 + $0x500] sm:$0xff]
  %v172 = vld [vmem:[%s1 + $0x508] sm:$0xff]
  %v173 = vld [vmem:[%s1 + $0x510] sm:$0xff]
  %v174 = vld [vmem:[%s1 + $0x518] sm:$0xff]
  %v175 = vld [vmem:[%s1 + $0x520] sm:$0xff]
  %v176 = vld [vmem:[%s1 + $0x528] sm:$0xff]
  %v177 = vld [vmem:[%s1 + $0x530] sm:$0xff]
  %v178 = vld [vmem:[%s1 + $0x538] sm:$0xff]
  %v179 = vld [vmem:[%s1 + $0x540] sm:$0xff]
  %v180 = vld [vmem:[%s1 + $0x548] sm:$0xff]
  %v181 = vld [vmem:[%s1 + $0x550] sm:$0xff]
  %v182 = vld [vmem:[%s1 + $0x558] sm:$0xff]
  %v183 = vld [vmem:[%s1 + $0x560] sm:$0xff]
  %v184 = vld [vmem:[%s1 + $0x568] sm:$0xff]
  %v185 = vld [vmem:[%s1 + $0x570] sm:$0xff]
  %v186 = vld [vmem:[%s1 + $0x578] sm:$0xff]
  %v187 = vld [vmem:[%s1 + $0x580] sm:$0xff]
  %v188 = vld [vmem:[%s1 + $0x588] sm:$0xff]
  %v189 = vld [vmem:[%s1 + $0x590] sm:$0xff]
  %v190 = vld [vmem:[%s1 + $0x598] sm:$0xff]
  %v191 = vld [vmem:[%s1 + $0x5a0] sm:$0xff]
  %v192 = vld [vmem:[%s1 + $0x5a8] sm:$0xff]
  %v193 = vld [vmem:[%s1 + $0x5b0] sm:$0xff]
  %v194 = vld [vmem:[%s1 + $0x5b8] sm:$0xff]
  %v195 = vld [vmem:[%s1 + $0x5c0] sm:$0xff]
  %v196 = vld [vmem:[%s1 + $0x5c8] sm:$0xff]
  %v197 = vld [vmem:[%s1 + $0x5d0] sm:$0xff]
  %v198 = vld [vmem:[%s1 + $0x5d8] sm:$0xff]
  %v199 = vld [vmem:[%s1 + $0x5e0] sm:$0xff]
  %v200 = vld [vmem:[%s1 + $0x5e8] sm:$0xff]
  %v201 = vld [vmem:[%s1 + $0x5f0] sm:$0xff]
  %v202 = vld [vmem:[%s1 + $0x5f8] sm:$0xff]
  %v203 = vld [vmem:[%s0] sm:$0xff]
  %v204 = vld [vmem:[%s0 + $0x8] sm:$0xff]
  %v205 = vld [vmem:[%s0 + $0x10] sm:$0xff]
  %v206 = vld [vmem:[%s0 + $0x18] sm:$0xff]
  %v207 = vld [vmem:[%s0 + $0x20] sm:$0xff]
  %v208 = vld [vmem:[%s0 + $0x28] sm:$0xff]
  %v209 = vld [vmem:[%s0 + $0x30] sm:$0xff]
  %v210 = vld [vmem:[%s0 + $0x38] sm:$0xff]
  %v211 = vld [vmem:[%s0 + $0x40] sm:$0xff]
  %v212 = vld [vmem:[%s0 + $0x48] sm:$0xff]
  %v213 = vld [vmem:[%s0 + $0x50] sm:$0xff]
  %v214 = vld [vmem:[%s0 + $0x58] sm:$0xff]
  %v215 = vld [vmem:[%s0 + $0x60] sm:$0xff]
  %v216 = vld [vmem:[%s0 + $0x68] sm:$0xff]
  %v217 = vld [vmem:[%s0 + $0x70] sm:$0xff]
  %v218 = vld [vmem:[%s0 + $0x78] sm:$0xff]
  %v219 = vld [vmem:[%s0 + $0x80] sm:$0xff]
  %v220 = vld [vmem:[%s0 + $0x88] sm:$0xff]
  %v221 = vld [vmem:[%s0 + $0x90] sm:$0xff]
  %v222 = vld [vmem:[%s0 + $0x98] sm:$0xff]
  %v223 = vld [vmem:[%s0 + $0xa0] sm:$0xff]
  %v224 = vld [vmem:[%s0 + $0xa8] sm:$0xff]
  %v225 = vld [vmem:[%s0 + $0xb0] sm:$0xff]
  %v226 = vld [vmem:[%s0 + $0xb8] sm:$0xff]
  %v227 = vld [vmem:[%s0 + $0xc0] sm:$0xff]
  %v228 = vld [vmem:[%s0 + $0xc8] sm:$0xff]
  %v229 = vld [vmem:[%s0 + $0xd0] sm:$0xff]
  %v230 = vld [vmem:[%s0 + $0xd8] sm:$0xff]
  %v231 = vld [vmem:[%s0 + $0xe0] sm:$0xff]
  %v232 = vld [vmem:[%s0 + $0xe8] sm:$0xff]
  %v233 = vld [vmem:[%s0 + $0xf0] sm:$0xff]
  %v234 = vld [vmem:[%s0 + $0xf8] sm:$0xff]
  %v235 = vld [vmem:[%s0 + $0x100] sm:$0xff]
  %v236 = vld [vmem:[%s0 + $0x108] sm:$0xff]
  %v237 = vld [vmem:[%s0 + $0x110] sm:$0xff]
  %v238 = vld [vmem:[%s0 + $0x118] sm:$0xff]
  %v239 = vld [vmem:[%s0 + $0x120] sm:$0xff]
  %v240 = vld [vmem:[%s0 + $0x128] sm:$0xff]
  %v241 = vld [vmem:[%s0 + $0x130] sm:$0xff]
  %v242 = vld [vmem:[%s0 + $0x138] sm:$0xff]
  %v243 = vld [vmem:[%s0 + $0x140] sm:$0xff]
  %v244 = vld [vmem:[%s0 + $0x148] sm:$0xff]
  %v245 = vld [vmem:[%s0 + $0x150] sm:$0xff]
  %v246 = vld [vmem:[%s0 + $0x158] sm:$0xff]
  %v247 = vld [vmem:[%s0 + $0x160] sm:$0xff]
  %v248 = vld [vmem:[%s0 + $0x168] sm:$0xff]
  %v249 = vld [vmem:[%s0 + $0x170] sm:$0xff]
  %v250 = vld [vmem:[%s0 + $0x178] sm:$0xff]
  %v251 = vld [vmem:[%s0 + $0x180] sm:$0xff]
  %v252 = vld [vmem:[%s0 + $0x188] sm:$0xff]
  %v253 = vld [vmem:[%s0 + $0x190] sm:$0xff]
  %v254 = vld [vmem:[%s0 + $0x198] sm:$0xff]
  %v255 = vld [vmem:[%s0 + $0x1a0] sm:$0xff]
  %v256 = vld [vmem:[%s0 + $0x1a8] sm:$0xff]
  %v257 = vld [vmem:[%s0 + $0x1b0] sm:$0xff]
  %v258 = vld [vmem:[%s0 + $0x1b8] sm:$0xff]
  %v259 = vld [vmem:[%s0 + $0x1c0] sm:$0xff]
  %v260 = vld [vmem:[%s0 + $0x1c8] sm:$0xff]
  %v261 = vld [vmem:[%s0 + $0x1d0] sm:$0xff]
  %v262 = vld [vmem:[%s0 + $0x1d8] sm:$0xff]
  %v263 = vld [vmem:[%s0 + $0x1e0] sm:$0xff]
  %v264 = vld [vmem:[%s0 + $0x1e8] sm:$0xff]
  %v265 = vld [vmem:[%s0 + $0x1f0] sm:$0xff]
  %v266 = vld [vmem:[%s0 + $0x1f8] sm:$0xff]
  %v267 = vld [vmem:[%s0 + $0x200] sm:$0xff]
  %v268 = vld [vmem:[%s0 + $0x208] sm:$0xff]
  %v269 = vld [vmem:[%s0 + $0x210] sm:$0xff]
  %v270 = vld [vmem:[%s0 + $0x218] sm:$0xff]
  %v271 = vld [vmem:[%s0 + $0x220] sm:$0xff]
  %v272 = vld [vmem:[%s0 + $0x228] sm:$0xff]
  %v273 = vld [vmem:[%s0 + $0x230] sm:$0xff]
  %v274 = vld [vmem:[%s0 + $0x238] sm:$0xff]
  %v275 = vld [vmem:[%s0 + $0x240] sm:$0xff]
  %v276 = vld [vmem:[%s0 + $0x248] sm:$0xff]
  %v277 = vld [vmem:[%s0 + $0x250] sm:$0xff]
  %v278 = vld [vmem:[%s0 + $0x258] sm:$0xff]
  %v279 = vld [vmem:[%s0 + $0x260] sm:$0xff]
  %v280 = vld [vmem:[%s0 + $0x268] sm:$0xff]
  %v281 = vld [vmem:[%s0 + $0x270] sm:$0xff]
  %v282 = vld [vmem:[%s0 + $0x278] sm:$0xff]
  %v283 = vld [vmem:[%s0 + $0x280] sm:$0xff]
  %v284 = vld [vmem:[%s0 + $0x288] sm:$0xff]
  %v285 = vld [vmem:[%s0 + $0x290] sm:$0xff]
  %v286 = vld [vmem:[%s0 + $0x298] sm:$0xff]
  %v287 = vld [vmem:[%s0 + $0x2a0] sm:$0xff]
  %v288 = vld [vmem:[%s0 + $0x2a8] sm:$0xff]
  %v289 = vld [vmem:[%s0 + $0x2b0] sm:$0xff]
  %v290 = vld [vmem:[%s0 + $0x2b8] sm:$0xff]
  %v291 = vld [vmem:[%s0 + $0x2c0] sm:$0xff]
  %v292 = vld [vmem:[%s0 + $0x2c8] sm:$0xff]
  %v293 = vld [vmem:[%s0 + $0x2d0] sm:$0xff]
  %v294 = vld [vmem:[%s0 + $0x2d8] sm:$0xff]
  %v295 = vld [vmem:[%s0 + $0x2e0] sm:$0xff]
  %v296 = vld [vmem:[%s0 + $0x2e8] sm:$0xff]
  %v297 = vld [vmem:[%s0 + $0x2f0] sm:$0xff]
  %v298 = vld [vmem:[%s0 + $0x2f8] sm:$0xff]
  %v299 = vld [vmem:[%s0 + $0x300] sm:$0xff]
  %v300 = vld [vmem:[%s0 + $0x308] sm:$0xff]
  %v301 = vld [vmem:[%s0 + $0x310] sm:$0xff]
  %v302 = vld [vmem:[%s0 + $0x318] sm:$0xff]
  %v303 = vld [vmem:[%s0 + $0x320] sm:$0xff]
  %v304 = vld [vmem:[%s0 + $0x328] sm:$0xff]
  %v305 = vld [vmem:[%s0 + $0x330] sm:$0xff]
  %v306 = vld [vmem:[%s0 + $0x338] sm:$0xff]
  %v307 = vld [vmem:[%s0 + $0x340] sm:$0xff]
  %v308 = vld [vmem:[%s0 + $0x348] sm:$0xff]
  %v309 = vld [vmem:[%s0 + $0x350] sm:$0xff]
  %v310 = vld [vmem:[%s0 + $0x358] sm:$0xff]
  %v311 = vld [vmem:[%s0 + $0x360] sm:$0xff]
  %v312 = vld [vmem:[%s0 + $0x368] sm:$0xff]
  %v313 = vld [vmem:[%s0 + $0x370] sm:$0xff]
  %v314 = vld [vmem:[%s0 + $0x378] sm:$0xff]
  %v315 = vld [vmem:[%s0 + $0x380] sm:$0xff]
  %v316 = vld [vmem:[%s0 + $0x388] sm:$0xff]
  %v317 = vld [vmem:[%s0 + $0x390] sm:$0xff]
  %v318 = vld [vmem:[%s0 + $0x398] sm:$0xff]
  %v319 = vld [vmem:[%s0 + $0x3a0] sm:$0xff]
  %v320 = vld [vmem:[%s0 + $0x3a8] sm:$0xff]
  %v321 = vld [vmem:[%s0 + $0x3b0] sm:$0xff]
  %v322 = vld [vmem:[%s0 + $0x3b8] sm:$0xff]
  %v323 = vld [vmem:[%s0 + $0x3c0] sm:$0xff]
  %v324 = vld [vmem:[%s0 + $0x3c8] sm:$0xff]
  %v325 = vld [vmem:[%s0 + $0x3d0] sm:$0xff]
  %v326 = vld [vmem:[%s0 + $0x3d8] sm:$0xff]
  %v327 = vld [vmem:[%s0 + $0x3e0] sm:$0xff]
  %v328 = vld [vmem:[%s0 + $0x3e8] sm:$0xff]
  %v329 = vld [vmem:[%s0 + $0x3f0] sm:$0xff]
  %v330 = vld [vmem:[%s0 + $0x3f8] sm:$0xff]
  %v331 = vld [vmem:[%s0 + $0x400] sm:$0xff]
  %v332 = vld [vmem:[%s0 + $0x408] sm:$0xff]
  %v333 = vld [vmem:[%s0 + $0x410] sm:$0xff]
  %v334 = vld [vmem:[%s0 + $0x418] sm:$0xff]
  %v335 = vld [vmem:[%s0 + $0x420] sm:$0xff]
  %v336 = vld [vmem:[%s0 + $0x428] sm:$0xff]
  %v337 = vld [vmem:[%s0 + $0x430] sm:$0xff]
  %v338 = vld [vmem:[%s0 + $0x438] sm:$0xff]
  %v339 = vld [vmem:[%s0 + $0x440] sm:$0xff]
  %v340 = vld [vmem:[%s0 + $0x448] sm:$0xff]
  %v341 = vld [vmem:[%s0 + $0x450] sm:$0xff]
  %v342 = vld [vmem:[%s0 + $0x458] sm:$0xff]
  %v343 = vld [vmem:[%s0 + $0x460] sm:$0xff]
  %v344 = vld [vmem:[%s0 + $0x468] sm:$0xff]
  %v345 = vld [vmem:[%s0 + $0x470] sm:$0xff]
  %v346 = vld [vmem:[%s0 + $0x478] sm:$0xff]
  %v347 = vld [vmem:[%s0 + $0x480] sm:$0xff]
  %v348 = vld [vmem:[%s0 + $0x488] sm:$0xff]
  %v349 = vld [vmem:[%s0 + $0x490] sm:$0xff]
  %v350 = vld [vmem:[%s0 + $0x498] sm:$0xff]
  %v351 = vld [vmem:[%s0 + $0x4a0] sm:$0xff]
  %v352 = vld [vmem:[%s0 + $0x4a8] sm:$0xff]
  %v353 = vld [vmem:[%s0 + $0x4b0] sm:$0xff]
  %v354 = vld [vmem:[%s0 + $0x4b8] sm:$0xff]
  %v355 = vld [vmem:[%s0 + $0x4c0] sm:$0xff]
  %v356 = vld [vmem:[%s0 + $0x4c8] sm:$0xff]
  %v357 = vld [vmem:[%s0 + $0x4d0] sm:$0xff]
  %v358 = vld [vmem:[%s0 + $0x4d8] sm:$0xff]
  %v359 = vld [vmem:[%s0 + $0x4e0] sm:$0xff]
  %v360 = vld [vmem:[%s0 + $0x4e8] sm:$0xff]
  %v361 = vld [vmem:[%s0 + $0x4f0] sm:$0xff]
  %v362 = vld [vmem:[%s0 + $0x4f8] sm:$0xff]
  %v363 = vld [vmem:[%s0 + $0x500] sm:$0xff]
  %v364 = vld [vmem:[%s0 + $0x508] sm:$0xff]
  %v365 = vld [vmem:[%s0 + $0x510] sm:$0xff]
  %v366 = vld [vmem:[%s0 + $0x518] sm:$0xff]
  %v367 = vld [vmem:[%s0 + $0x520] sm:$0xff]
  %v368 = vld [vmem:[%s0 + $0x528] sm:$0xff]
  %v369 = vld [vmem:[%s0 + $0x530] sm:$0xff]
  %v370 = vld [vmem:[%s0 + $0x538] sm:$0xff]
  %v371 = vld [vmem:[%s0 + $0x540] sm:$0xff]
  %v372 = vld [vmem:[%s0 + $0x548] sm:$0xff]
  %v373 = vld [vmem:[%s0 + $0x550] sm:$0xff]
  %v374 = vld [vmem:[%s0 + $0x558] sm:$0xff]
  %v375 = vld [vmem:[%s0 + $0x560] sm:$0xff]
  %v376 = vld [vmem:[%s0 + $0x568] sm:$0xff]
  %v377 = vld [vmem:[%s0 + $0x570] sm:$0xff]
  %v378 = vld [vmem:[%s0 + $0x578] sm:$0xff]
  %v379 = vld [vmem:[%s0 + $0x580] sm:$0xff]
  %v380 = vld [vmem:[%s0 + $0x588] sm:$0xff]
  %v381 = vld [vmem:[%s0 + $0x590] sm:$0xff]
  %v382 = vld [vmem:[%s0 + $0x598] sm:$0xff]
  %v383 = vld [vmem:[%s0 + $0x5a0] sm:$0xff]
  %v384 = vld [vmem:[%s0 + $0x5a8] sm:$0xff]
  %v385 = vld [vmem:[%s0 + $0x5b0] sm:$0xff]
  %v386 = vld [vmem:[%s0 + $0x5b8] sm:$0xff]
  %v387 = vmax.f32 %v203, 0.0
  %v388 = vmax.f32 %v204, 0.0
  %v389 = vmax.f32 %v205, 0.0
  %v390 = vmax.f32 %v206, 0.0
  %v391 = vmax.f32 %v207, 0.0
  %v392 = vmax.f32 %v208, 0.0
  %v393 = vmax.f32 %v209, 0.0
  %v394 = vmax.f32 %v210, 0.0
  %v395 = vmax.f32 %v211, 0.0
  %v396 = vmax.f32 %v212, 0.0
  %v397 = vmax.f32 %v213, 0.0
  %v398 = vmax.f32 %v214, 0.0
  %v399 = vmax.f32 %v215, 0.0
  %v400 = vmax.f32 %v216, 0.0
  %v401 = vmax.f32 %v217, 0.0
  %v402 = vmax.f32 %v218, 0.0
  %v403 = vmax.f32 %v219, 0.0
  %v404 = vmax.f32 %v220, 0.0
  %v405 = vmax.f32 %v221, 0.0
  %v406 = vmax.f32 %v222, 0.0
  %v407 = vmax.f32 %v223, 0.0
  %v408 = vmax.f32 %v224, 0.0
  %v409 = vmax.f32 %v225, 0.0
  %v410 = vmax.f32 %v226, 0.0
  %v411 = vmax.f32 %v227, 0.0
  %v412 = vmax.f32 %v228, 0.0
  %v413 = vmax.f32 %v229, 0.0
  %v414 = vmax.f32 %v230, 0.0
  %v415 = vmax.f32 %v231, 0.0
  %v416 = vmax.f32 %v232, 0.0
  %v417 = vmax.f32 %v233, 0.0
  %v418 = vmax.f32 %v234, 0.0
  %v419 = vmax.f32 %v235, 0.0
  %v420 = vmax.f32 %v236, 0.0
  %v421 = vmax.f32 %v237, 0.0
  %v422 = vmax.f32 %v238, 0.0
  %v423 = vmax.f32 %v239, 0.0
  %v424 = vmax.f32 %v240, 0.0
  %v425 = vmax.f32 %v241, 0.0
  %v426 = vmax.f32 %v242, 0.0
  %v427 = vmax.f32 %v243, 0.0
  %v428 = vmax.f32 %v244, 0.0
  %v429 = vmax.f32 %v245, 0.0
  %v430 = vmax.f32 %v246, 0.0
  %v431 = vmax.f32 %v247, 0.0
  %v432 = vmax.f32 %v248, 0.0
  %v433 = vmax.f32 %v249, 0.0
  %v434 = vmax.f32 %v250, 0.0
  %v435 = vmax.f32 %v251, 0.0
  %v436 = vmax.f32 %v252, 0.0
  %v437 = vmax.f32 %v253, 0.0
  %v438 = vmax.f32 %v254, 0.0
  %v439 = vmax.f32 %v255, 0.0
  %v440 = vmax.f32 %v256, 0.0
  %v441 = vmax.f32 %v257, 0.0
  %v442 = vmax.f32 %v258, 0.0
  %v443 = vmax.f32 %v259, 0.0
  %v444 = vmax.f32 %v260, 0.0
  %v445 = vmax.f32 %v261, 0.0
  %v446 = vmax.f32 %v262, 0.0
  %v447 = vmax.f32 %v263, 0.0
  %v448 = vmax.f32 %v264, 0.0
  %v449 = vmax.f32 %v265, 0.0
  %v450 = vmax.f32 %v266, 0.0
  %v451 = vmax.f32 %v267, 0.0
  %v452 = vmax.f32 %v268, 0.0
  %v453 = vmax.f32 %v269, 0.0
  %v454 = vmax.f32 %v270, 0.0
  %v455 = vmax.f32 %v271, 0.0
  %v456 = vmax.f32 %v272, 0.0
  %v457 = vmax.f32 %v273, 0.0
  %v458 = vmax.f32 %v274, 0.0
  %v459 = vmax.f32 %v275, 0.0
  %v460 = vmax.f32 %v276, 0.0
  %v461 = vmax.f32 %v277, 0.0
  %v462 = vmax.f32 %v278, 0.0
  %v463 = vmax.f32 %v279, 0.0
  %v464 = vmax.f32 %v280, 0.0
  %v465 = vmax.f32 %v281, 0.0
  %v466 = vmax.f32 %v282, 0.0
  %v467 = vmax.f32 %v283, 0.0
  %v468 = vmax.f32 %v284, 0.0
  %v469 = vmax.f32 %v285, 0.0
  %v470 = vmax.f32 %v286, 0.0
  %v471 = vmax.f32 %v287, 0.0
  %v472 = vmax.f32 %v288, 0.0
  %v473 = vmax.f32 %v289, 0.0
  %v474 = vmax.f32 %v290, 0.0
  %v475 = vmax.f32 %v291, 0.0
  %v476 = vmax.f32 %v292, 0.0
  %v477 = vmax.f32 %v293, 0.0
  %v478 = vmax.f32 %v294, 0.0
  %v479 = vmax.f32 %v295, 0.0
  %v480 = vmax.f32 %v296, 0.0
  %v481 = vmax.f32 %v297, 0.0
  %v482 = vmax.f32 %v298, 0.0
  %v483 = vmax.f32 %v299, 0.0
  %v484 = vmax.f32 %v300, 0.0
  %v485 = vmax.f32 %v301, 0.0
  %v486 = vmax.f32 %v302, 0.0
  %v487 = vmax.f32 %v303, 0.0
  %v488 = vmax.f32 %v304, 0.0
  %v489 = vmax.f32 %v305, 0.0
  %v490 = vmax.f32 %v306, 0.0
  %v491 = vmax.f32 %v307, 0.0
  %v492 = vmax.f32 %v308, 0.0
  %v493 = vmax.f32 %v309, 0.0
  %v494 = vmax.f32 %v310, 0.0
  %v495 = vmax.f32 %v311, 0.0
  %v496 = vmax.f32 %v312, 0.0
  %v497 = vmax.f32 %v313, 0.0
  %v498 = vmax.f32 %v314, 0.0
  %v499 = vmax.f32 %v315, 0.0
  %v500 = vmax.f32 %v316, 0.0
  %v501 = vmax.f32 %v317, 0.0
  %v502 = vmax.f32 %v318, 0.0
  %v503 = vmax.f32 %v319, 0.0
  %v504 = vmax.f32 %v320, 0.0
  %v505 = vmax.f32 %v321, 0.0
  %v506 = vmax.f32 %v322, 0.0
  %v507 = vmax.f32 %v323, 0.0
  %v508 = vmax.f32 %v324, 0.0
  %v509 = vmax.f32 %v325, 0.0
  %v510 = vmax.f32 %v326, 0.0
  %v511 = vmax.f32 %v327, 0.0
  %v512 = vmax.f32 %v328, 0.0
  %v513 = vmax.f32 %v329, 0.0
  %v514 = vmax.f32 %v330, 0.0
  %v515 = vmax.f32 %v331, 0.0
  %v516 = vmax.f32 %v332, 0.0
  %v517 = vmax.f32 %v333, 0.0
  %v518 = vmax.f32 %v334, 0.0
  %v519 = vmax.f32 %v335, 0.0
  %v520 = vmax.f32 %v336, 0.0
  %v521 = vmax.f32 %v337, 0.0
  %v522 = vmax.f32 %v338, 0.0
  %v523 = vmax.f32 %v339, 0.0
  %v524 = vmax.f32 %v340, 0.0
  %v525 = vmax.f32 %v341, 0.0
  %v526 = vmax.f32 %v342, 0.0
  %v527 = vmax.f32 %v343, 0.0
  %v528 = vmax.f32 %v344, 0.0
  %v529 = vmax.f32 %v345, 0.0
  %v530 = vmax.f32 %v346, 0.0
  %v531 = vmax.f32 %v347, 0.0
  %v532 = vmax.f32 %v348, 0.0
  %v533 = vmax.f32 %v349, 0.0
  %v534 = vmax.f32 %v350, 0.0
  %v535 = vmax.f32 %v351, 0.0
  %v536 = vmax.f32 %v352, 0.0
  %v537 = vmax.f32 %v353, 0.0
  %v538 = vmax.f32 %v354, 0.0
  %v539 = vmax.f32 %v355, 0.0
  %v540 = vmax.f32 %v356, 0.0
  %v541 = vmax.f32 %v357, 0.0
  %v542 = vmax.f32 %v358, 0.0
  %v543 = vmax.f32 %v359, 0.0
  %v544 = vmax.f32 %v360, 0.0
  %v545 = vmax.f32 %v361, 0.0
  %v546 = vmax.f32 %v362, 0.0
  %v547 = vmax.f32 %v363, 0.0
  %v548 = vmax.f32 %v364, 0.0
  %v549 = vmax.f32 %v365, 0.0
  %v550 = vmax.f32 %v366, 0.0
  %v551 = vmax.f32 %v367, 0.0
  %v552 = vmax.f32 %v368, 0.0
  %v553 = vmax.f32 %v369, 0.0
  %v554 = vmax.f32 %v370, 0.0
  %v555 = vmax.f32 %v371, 0.0
  %v556 = vmax.f32 %v372, 0.0
  %v557 = vmax.f32 %v373, 0.0
  %v558 = vmax.f32 %v374, 0.0
  %v559 = vmax.f32 %v375, 0.0
  %v560 = vmax.f32 %v376, 0.0
  %v561 = vmax.f32 %v377, 0.0
  %v562 = vmax.f32 %v378, 0.0
  %v563 = vmax.f32 %v379, 0.0
  %v564 = vmax.f32 %v380, 0.0
  %v565 = vmax.f32 %v381, 0.0
  %v566 = vmax.f32 %v382, 0.0
  %v567 = vmax.f32 %v383, 0.0
  %v568 = vmax.f32 %v384, 0.0
  %v569 = vmax.f32 %v385, 0.0
  %v570 = vmax.f32 %v386, 0.0
  %vm571 = vcmask 523264
  %v573 = vsel %vm571, %v22, 0
  %v576 = vsel %vm571, %v34, 0
  %v579 = vsel %vm571, %v46, 0
  %v582 = vsel %vm571, %v58, 0
  %v585 = vsel %vm571, %v70, 0
  %v588 = vsel %vm571, %v82, 0
  %v591 = vsel %vm571, %v94, 0
  %v594 = vsel %vm571, %v106, 0
  %v597 = vsel %vm571, %v118, 0
  %v600 = vsel %vm571, %v130, 0
  %v603 = vsel %vm571, %v142, 0
  %v606 = vsel %vm571, %v154, 0
  %v609 = vsel %vm571, %v166, 0
  %v612 = vsel %vm571, %v178, 0
  %v615 = vsel %vm571, %v190, 0
  %v618 = vsel %vm571, %v202, 0
  %620 = vmatpush.msra.mxu0 %v402
  %621 = vmatpush.msra.mxu0 %v401
  %622 = vmatpush.msra.mxu0 %v400
  %623 = vmatpush.msra.mxu0 %v399
  %624 = vmatpush.msra.mxu0 %v398
  %625 = vmatpush.msra.mxu0 %v397
  %626 = vmatpush.msra.mxu0 %v396
  %627 = vmatpush.msra.mxu0 %v395
  %628 = vmatpush.msra.mxu0 %v394
  %629 = vmatpush.msra.mxu0 %v393
  %630 = vmatpush.msra.mxu0 %v392
  %631 = vmatpush.msra.mxu0 %v391
  %632 = vmatpush.msra.mxu0 %v390
  %633 = vmatpush.msra.mxu0 %v389
  %634 = vmatpush.msra.mxu0 %v388
  %635 = vmatpush.msra.mxu0 %v387
  %636 = vmatmul.f32.gmra.mxu0 %v11
  %v637 = vpop.f32.mrf.mxu0
  %v638 = vadd.f32 0.0, %v637
  %639 = vmatmul.f32.gmra.mxu0 %v23
  %v640 = vpop.f32.mrf.mxu0
  %v641 = vadd.f32 0.0, %v640
  %642 = vmatmul.f32.gmra.mxu0 %v35
  %v643 = vpop.f32.mrf.mxu0
  %v644 = vadd.f32 0.0, %v643
  %645 = vmatmul.f32.gmra.mxu0 %v47
  %v646 = vpop.f32.mrf.mxu0
  %v647 = vadd.f32 0.0, %v646
  %648 = vmatmul.f32.gmra.mxu0 %v59
  %v649 = vpop.f32.mrf.mxu0
  %v650 = vadd.f32 0.0, %v649
  %651 = vmatmul.f32.gmra.mxu0 %v71
  %v652 = vpop.f32.mrf.mxu0
  %v653 = vadd.f32 0.0, %v652
  %654 = vmatmul.f32.gmra.mxu0 %v83
  %v655 = vpop.f32.mrf.mxu0
  %v656 = vadd.f32 0.0, %v655
  %657 = vmatmul.f32.gmra.mxu0 %v95
  %v658 = vpop.f32.mrf.mxu0
  %v659 = vadd.f32 0.0, %v658
  %660 = vmatmul.f32.gmra.mxu0 %v107
  %v661 = vpop.f32.mrf.mxu0
  %v662 = vadd.f32 0.0, %v661
  %663 = vmatmul.f32.gmra.mxu0 %v119
  %v664 = vpop.f32.mrf.mxu0
  %v665 = vadd.f32 0.0, %v664
  %666 = vmatmul.f32.gmra.mxu0 %v131
  %v667 = vpop.f32.mrf.mxu0
  %v668 = vadd.f32 0.0, %v667
  %669 = vmatmul.f32.gmra.mxu0 %v143
  %v670 = vpop.f32.mrf.mxu0
  %v671 = vadd.f32 0.0, %v670
  %672 = vmatmul.f32.gmra.mxu0 %v155
  %v673 = vpop.f32.mrf.mxu0
  %v674 = vadd.f32 0.0, %v673
  %675 = vmatmul.f32.gmra.mxu0 %v167
  %v676 = vpop.f32.mrf.mxu0
  %v677 = vadd.f32 0.0, %v676
  %678 = vmatmul.f32.gmra.mxu0 %v179
  %v679 = vpop.f32.mrf.mxu0
  %v680 = vadd.f32 0.0, %v679
  %681 = vmatmul.f32.gmra.mxu0 %v191
  %v682 = vpop.f32.mrf.mxu0
  %v683 = vadd.f32 0.0, %v682
  %684 = vdwg.mxu0
  %685 = vmatpush.msra.mxu0 %v418
  %686 = vmatpush.msra.mxu0 %v417
  %687 = vmatpush.msra.mxu0 %v416
  %688 = vmatpush.msra.mxu0 %v415
  %689 = vmatpush.msra.mxu0 %v414
  %690 = vmatpush.msra.mxu0 %v413
  %691 = vmatpush.msra.mxu0 %v412
  %692 = vmatpush.msra.mxu0 %v411
  %693 = vmatpush.msra.mxu0 %v410
  %694 = vmatpush.msra.mxu0 %v409
  %695 = vmatpush.msra.mxu0 %v408
  %696 = vmatpush.msra.mxu0 %v407
  %697 = vmatpush.msra.mxu0 %v406
  %698 = vmatpush.msra.mxu0 %v405
  %699 = vmatpush.msra.mxu0 %v404
  %700 = vmatpush.msra.mxu0 %v403
  %701 = vmatmul.f32.gmra.mxu0 %v12
  %v702 = vpop.f32.mrf.mxu0
  %v703 = vadd.f32 %v638, %v702
  %704 = vmatmul.f32.gmra.mxu0 %v24
  %v705 = vpop.f32.mrf.mxu0
  %v706 = vadd.f32 %v641, %v705
  %707 = vmatmul.f32.gmra.mxu0 %v36
  %v708 = vpop.f32.mrf.mxu0
  %v709 = vadd.f32 %v644, %v708
  %710 = vmatmul.f32.gmra.mxu0 %v48
  %v711 = vpop.f32.mrf.mxu0
  %v712 = vadd.f32 %v647, %v711
  %713 = vmatmul.f32.gmra.mxu0 %v60
  %v714 = vpop.f32.mrf.mxu0
  %v715 = vadd.f32 %v650, %v714
  %716 = vmatmul.f32.gmra.mxu0 %v72
  %v717 = vpop.f32.mrf.mxu0
  %v718 = vadd.f32 %v653, %v717
  %719 = vmatmul.f32.gmra.mxu0 %v84
  %v720 = vpop.f32.mrf.mxu0
  %v721 = vadd.f32 %v656, %v720
  %722 = vmatmul.f32.gmra.mxu0 %v96
  %v723 = vpop.f32.mrf.mxu0
  %v724 = vadd.f32 %v659, %v723
  %725 = vmatmul.f32.gmra.mxu0 %v108
  %v726 = vpop.f32.mrf.mxu0
  %v727 = vadd.f32 %v662, %v726
  %728 = vmatmul.f32.gmra.mxu0 %v120
  %v729 = vpop.f32.mrf.mxu0
  %v730 = vadd.f32 %v665, %v729
  %731 = vmatmul.f32.gmra.mxu0 %v132
  %v732 = vpop.f32.mrf.mxu0
  %v733 = vadd.f32 %v668, %v732
  %734 = vmatmul.f32.gmra.mxu0 %v144
  %v735 = vpop.f32.mrf.mxu0
  %v736 = vadd.f32 %v671, %v735
  %737 = vmatmul.f32.gmra.mxu0 %v156
  %v738 = vpop.f32.mrf.mxu0
  %v739 = vadd.f32 %v674, %v738
  %740 = vmatmul.f32.gmra.mxu0 %v168
  %v741 = vpop.f32.mrf.mxu0
  %v742 = vadd.f32 %v677, %v741
  %743 = vmatmul.f32.gmra.mxu0 %v180
  %v744 = vpop.f32.mrf.mxu0
  %v745 = vadd.f32 %v680, %v744
  %746 = vmatmul.f32.gmra.mxu0 %v192
  %v747 = vpop.f32.mrf.mxu0
  %v748 = vadd.f32 %v683, %v747
  %749 = vdwg.mxu0
  %750 = vmatpush.msra.mxu0 %v434
  %751 = vmatpush.msra.mxu0 %v433
  %752 = vmatpush.msra.mxu0 %v432
  %753 = vmatpush.msra.mxu0 %v431
  %754 = vmatpush.msra.mxu0 %v430
  %755 = vmatpush.msra.mxu0 %v429
  %756 = vmatpush.msra.mxu0 %v428
  %757 = vmatpush.msra.mxu0 %v427
  %758 = vmatpush.msra.mxu0 %v426
  %759 = vmatpush.msra.mxu0 %v425
  %760 = vmatpush.msra.mxu0 %v424
  %761 = vmatpush.msra.mxu0 %v423
  %762 = vmatpush.msra.mxu0 %v422
  %763 = vmatpush.msra.mxu0 %v421
  %764 = vmatpush.msra.mxu0 %v420
  %765 = vmatpush.msra.mxu0 %v419
  %766 = vmatmul.f32.gmra.mxu0 %v13
  %v767 = vpop.f32.mrf.mxu0
  %v768 = vadd.f32 %v703, %v767
  %769 = vmatmul.f32.gmra.mxu0 %v25
  %v770 = vpop.f32.mrf.mxu0
  %v771 = vadd.f32 %v706, %v770
  %772 = vmatmul.f32.gmra.mxu0 %v37
  %v773 = vpop.f32.mrf.mxu0
  %v774 = vadd.f32 %v709, %v773
  %775 = vmatmul.f32.gmra.mxu0 %v49
  %v776 = vpop.f32.mrf.mxu0
  %v777 = vadd.f32 %v712, %v776
  %778 = vmatmul.f32.gmra.mxu0 %v61
  %v779 = vpop.f32.mrf.mxu0
  %v780 = vadd.f32 %v715, %v779
  %781 = vmatmul.f32.gmra.mxu0 %v73
  %v782 = vpop.f32.mrf.mxu0
  %v783 = vadd.f32 %v718, %v782
  %784 = vmatmul.f32.gmra.mxu0 %v85
  %v785 = vpop.f32.mrf.mxu0
  %v786 = vadd.f32 %v721, %v785
  %787 = vmatmul.f32.gmra.mxu0 %v97
  %v788 = vpop.f32.mrf.mxu0
  %v789 = vadd.f32 %v724, %v788
  %790 = vmatmul.f32.gmra.mxu0 %v109
  %v791 = vpop.f32.mrf.mxu0
  %v792 = vadd.f32 %v727, %v791
  %793 = vmatmul.f32.gmra.mxu0 %v121
  %v794 = vpop.f32.mrf.mxu0
  %v795 = vadd.f32 %v730, %v794
  %796 = vmatmul.f32.gmra.mxu0 %v133
  %v797 = vpop.f32.mrf.mxu0
  %v798 = vadd.f32 %v733, %v797
  %799 = vmatmul.f32.gmra.mxu0 %v145
  %v800 = vpop.f32.mrf.mxu0
  %v801 = vadd.f32 %v736, %v800
  %802 = vmatmul.f32.gmra.mxu0 %v157
  %v803 = vpop.f32.mrf.mxu0
  %v804 = vadd.f32 %v739, %v803
  %805 = vmatmul.f32.gmra.mxu0 %v169
  %v806 = vpop.f32.mrf.mxu0
  %v807 = vadd.f32 %v742, %v806
  %808 = vmatmul.f32.gmra.mxu0 %v181
  %v809 = vpop.f32.mrf.mxu0
  %v810 = vadd.f32 %v745, %v809
  %811 = vmatmul.f32.gmra.mxu0 %v193
  %v812 = vpop.f32.mrf.mxu0
  %v813 = vadd.f32 %v748, %v812
  %814 = vdwg.mxu0
  %815 = vmatpush.msra.mxu0 %v450
  %816 = vmatpush.msra.mxu0 %v449
  %817 = vmatpush.msra.mxu0 %v448
  %818 = vmatpush.msra.mxu0 %v447
  %819 = vmatpush.msra.mxu0 %v446
  %820 = vmatpush.msra.mxu0 %v445
  %821 = vmatpush.msra.mxu0 %v444
  %822 = vmatpush.msra.mxu0 %v443
  %823 = vmatpush.msra.mxu0 %v442
  %824 = vmatpush.msra.mxu0 %v441
  %825 = vmatpush.msra.mxu0 %v440
  %826 = vmatpush.msra.mxu0 %v439
  %827 = vmatpush.msra.mxu0 %v438
  %828 = vmatpush.msra.mxu0 %v437
  %829 = vmatpush.msra.mxu0 %v436
  %830 = vmatpush.msra.mxu0 %v435
  %831 = vmatmul.f32.gmra.mxu0 %v14
  %v832 = vpop.f32.mrf.mxu0
  %v833 = vadd.f32 %v768, %v832
  %834 = vmatmul.f32.gmra.mxu0 %v26
  %v835 = vpop.f32.mrf.mxu0
  %v836 = vadd.f32 %v771, %v835
  %837 = vmatmul.f32.gmra.mxu0 %v38
  %v838 = vpop.f32.mrf.mxu0
  %v839 = vadd.f32 %v774, %v838
  %840 = vmatmul.f32.gmra.mxu0 %v50
  %v841 = vpop.f32.mrf.mxu0
  %v842 = vadd.f32 %v777, %v841
  %843 = vmatmul.f32.gmra.mxu0 %v62
  %v844 = vpop.f32.mrf.mxu0
  %v845 = vadd.f32 %v780, %v844
  %846 = vmatmul.f32.gmra.mxu0 %v74
  %v847 = vpop.f32.mrf.mxu0
  %v848 = vadd.f32 %v783, %v847
  %849 = vmatmul.f32.gmra.mxu0 %v86
  %v850 = vpop.f32.mrf.mxu0
  %v851 = vadd.f32 %v786, %v850
  %852 = vmatmul.f32.gmra.mxu0 %v98
  %v853 = vpop.f32.mrf.mxu0
  %v854 = vadd.f32 %v789, %v853
  %855 = vmatmul.f32.gmra.mxu0 %v110
  %v856 = vpop.f32.mrf.mxu0
  %v857 = vadd.f32 %v792, %v856
  %858 = vmatmul.f32.gmra.mxu0 %v122
  %v859 = vpop.f32.mrf.mxu0
  %v860 = vadd.f32 %v795, %v859
  %861 = vmatmul.f32.gmra.mxu0 %v134
  %v862 = vpop.f32.mrf.mxu0
  %v863 = vadd.f32 %v798, %v862
  %864 = vmatmul.f32.gmra.mxu0 %v146
  %v865 = vpop.f32.mrf.mxu0
  %v866 = vadd.f32 %v801, %v865
  %867 = vmatmul.f32.gmra.mxu0 %v158
  %v868 = vpop.f32.mrf.mxu0
  %v869 = vadd.f32 %v804, %v868
  %870 = vmatmul.f32.gmra.mxu0 %v170
  %v871 = vpop.f32.mrf.mxu0
  %v872 = vadd.f32 %v807, %v871
  %873 = vmatmul.f32.gmra.mxu0 %v182
  %v874 = vpop.f32.mrf.mxu0
  %v875 = vadd.f32 %v810, %v874
  %876 = vmatmul.f32.gmra.mxu0 %v194
  %v877 = vpop.f32.mrf.mxu0
  %v878 = vadd.f32 %v813, %v877
  %879 = vdwg.mxu0
  %880 = vmatpush.msra.mxu0 %v466
  %881 = vmatpush.msra.mxu0 %v465
  %882 = vmatpush.msra.mxu0 %v464
  %883 = vmatpush.msra.mxu0 %v463
  %884 = vmatpush.msra.mxu0 %v462
  %885 = vmatpush.msra.mxu0 %v461
  %886 = vmatpush.msra.mxu0 %v460
  %887 = vmatpush.msra.mxu0 %v459
  %888 = vmatpush.msra.mxu0 %v458
  %889 = vmatpush.msra.mxu0 %v457
  %890 = vmatpush.msra.mxu0 %v456
  %891 = vmatpush.msra.mxu0 %v455
  %892 = vmatpush.msra.mxu0 %v454
  %893 = vmatpush.msra.mxu0 %v453
  %894 = vmatpush.msra.mxu0 %v452
  %895 = vmatpush.msra.mxu0 %v451
  %896 = vmatmul.f32.gmra.mxu0 %v15
  %v897 = vpop.f32.mrf.mxu0
  %v898 = vadd.f32 %v833, %v897
  %899 = vmatmul.f32.gmra.mxu0 %v27
  %v900 = vpop.f32.mrf.mxu0
  %v901 = vadd.f32 %v836, %v900
  %902 = vmatmul.f32.gmra.mxu0 %v39
  %v903 = vpop.f32.mrf.mxu0
  %v904 = vadd.f32 %v839, %v903
  %905 = vmatmul.f32.gmra.mxu0 %v51
  %v906 = vpop.f32.mrf.mxu0
  %v907 = vadd.f32 %v842, %v906
  %908 = vmatmul.f32.gmra.mxu0 %v63
  %v909 = vpop.f32.mrf.mxu0
  %v910 = vadd.f32 %v845, %v909
  %911 = vmatmul.f32.gmra.mxu0 %v75
  %v912 = vpop.f32.mrf.mxu0
  %v913 = vadd.f32 %v848, %v912
  %914 = vmatmul.f32.gmra.mxu0 %v87
  %v915 = vpop.f32.mrf.mxu0
  %v916 = vadd.f32 %v851, %v915
  %917 = vmatmul.f32.gmra.mxu0 %v99
  %v918 = vpop.f32.mrf.mxu0
  %v919 = vadd.f32 %v854, %v918
  %920 = vmatmul.f32.gmra.mxu0 %v111
  %v921 = vpop.f32.mrf.mxu0
  %v922 = vadd.f32 %v857, %v921
  %923 = vmatmul.f32.gmra.mxu0 %v123
  %v924 = vpop.f32.mrf.mxu0
  %v925 = vadd.f32 %v860, %v924
  %926 = vmatmul.f32.gmra.mxu0 %v135
  %v927 = vpop.f32.mrf.mxu0
  %v928 = vadd.f32 %v863, %v927
  %929 = vmatmul.f32.gmra.mxu0 %v147
  %v930 = vpop.f32.mrf.mxu0
  %v931 = vadd.f32 %v866, %v930
  %932 = vmatmul.f32.gmra.mxu0 %v159
  %v933 = vpop.f32.mrf.mxu0
  %v934 = vadd.f32 %v869, %v933
  %935 = vmatmul.f32.gmra.mxu0 %v171
  %v936 = vpop.f32.mrf.mxu0
  %v937 = vadd.f32 %v872, %v936
  %938 = vmatmul.f32.gmra.mxu0 %v183
  %v939 = vpop.f32.mrf.mxu0
  %v940 = vadd.f32 %v875, %v939
  %941 = vmatmul.f32.gmra.mxu0 %v195
  %v942 = vpop.f32.mrf.mxu0
  %v943 = vadd.f32 %v878, %v942
  %944 = vdwg.mxu0
  %945 = vmatpush.msra.mxu0 %v482
  %946 = vmatpush.msra.mxu0 %v481
  %947 = vmatpush.msra.mxu0 %v480
  %948 = vmatpush.msra.mxu0 %v479
  %949 = vmatpush.msra.mxu0 %v478
  %950 = vmatpush.msra.mxu0 %v477
  %951 = vmatpush.msra.mxu0 %v476
  %952 = vmatpush.msra.mxu0 %v475
  %953 = vmatpush.msra.mxu0 %v474
  %954 = vmatpush.msra.mxu0 %v473
  %955 = vmatpush.msra.mxu0 %v472
  %956 = vmatpush.msra.mxu0 %v471
  %957 = vmatpush.msra.mxu0 %v470
  %958 = vmatpush.msra.mxu0 %v469
  %959 = vmatpush.msra.mxu0 %v468
  %960 = vmatpush.msra.mxu0 %v467
  %961 = vmatmul.f32.gmra.mxu0 %v16
  %v962 = vpop.f32.mrf.mxu0
  %v963 = vadd.f32 %v898, %v962
  %964 = vmatmul.f32.gmra.mxu0 %v28
  %v965 = vpop.f32.mrf.mxu0
  %v966 = vadd.f32 %v901, %v965
  %967 = vmatmul.f32.gmra.mxu0 %v40
  %v968 = vpop.f32.mrf.mxu0
  %v969 = vadd.f32 %v904, %v968
  %970 = vmatmul.f32.gmra.mxu0 %v52
  %v971 = vpop.f32.mrf.mxu0
  %v972 = vadd.f32 %v907, %v971
  %973 = vmatmul.f32.gmra.mxu0 %v64
  %v974 = vpop.f32.mrf.mxu0
  %v975 = vadd.f32 %v910, %v974
  %976 = vmatmul.f32.gmra.mxu0 %v76
  %v977 = vpop.f32.mrf.mxu0
  %v978 = vadd.f32 %v913, %v977
  %979 = vmatmul.f32.gmra.mxu0 %v88
  %v980 = vpop.f32.mrf.mxu0
  %v981 = vadd.f32 %v916, %v980
  %982 = vmatmul.f32.gmra.mxu0 %v100
  %v983 = vpop.f32.mrf.mxu0
  %v984 = vadd.f32 %v919, %v983
  %985 = vmatmul.f32.gmra.mxu0 %v112
  %v986 = vpop.f32.mrf.mxu0
  %v987 = vadd.f32 %v922, %v986
  %988 = vmatmul.f32.gmra.mxu0 %v124
  %v989 = vpop.f32.mrf.mxu0
  %v990 = vadd.f32 %v925, %v989
  %991 = vmatmul.f32.gmra.mxu0 %v136
  %v992 = vpop.f32.mrf.mxu0
  %v993 = vadd.f32 %v928, %v992
  %994 = vmatmul.f32.gmra.mxu0 %v148
  %v995 = vpop.f32.mrf.mxu0
  %v996 = vadd.f32 %v931, %v995
  %997 = vmatmul.f32.gmra.mxu0 %v160
  %v998 = vpop.f32.mrf.mxu0
  %v999 = vadd.f32 %v934, %v998
  %1000 = vmatmul.f32.gmra.mxu0 %v172
  %v1001 = vpop.f32.mrf.mxu0
  %v1002 = vadd.f32 %v937, %v1001
  %1003 = vmatmul.f32.gmra.mxu0 %v184
  %v1004 = vpop.f32.mrf.mxu0
  %v1005 = vadd.f32 %v940, %v1004
  %1006 = vmatmul.f32.gmra.mxu0 %v196
  %v1007 = vpop.f32.mrf.mxu0
  %v1008 = vadd.f32 %v943, %v1007
  %1009 = vdwg.mxu0
  %1010 = vmatpush.msra.mxu0 %v498
  %1011 = vmatpush.msra.mxu0 %v497
  %1012 = vmatpush.msra.mxu0 %v496
  %1013 = vmatpush.msra.mxu0 %v495
  %1014 = vmatpush.msra.mxu0 %v494
  %1015 = vmatpush.msra.mxu0 %v493
  %1016 = vmatpush.msra.mxu0 %v492
  %1017 = vmatpush.msra.mxu0 %v491
  %1018 = vmatpush.msra.mxu0 %v490
  %1019 = vmatpush.msra.mxu0 %v489
  %1020 = vmatpush.msra.mxu0 %v488
  %1021 = vmatpush.msra.mxu0 %v487
  %1022 = vmatpush.msra.mxu0 %v486
  %1023 = vmatpush.msra.mxu0 %v485
  %1024 = vmatpush.msra.mxu0 %v484
  %1025 = vmatpush.msra.mxu0 %v483
  %1026 = vmatmul.f32.gmra.mxu0 %v17
  %v1027 = vpop.f32.mrf.mxu0
  %v1028 = vadd.f32 %v963, %v1027
  %1029 = vmatmul.f32.gmra.mxu0 %v29
  %v1030 = vpop.f32.mrf.mxu0
  %v1031 = vadd.f32 %v966, %v1030
  %1032 = vmatmul.f32.gmra.mxu0 %v41
  %v1033 = vpop.f32.mrf.mxu0
  %v1034 = vadd.f32 %v969, %v1033
  %1035 = vmatmul.f32.gmra.mxu0 %v53
  %v1036 = vpop.f32.mrf.mxu0
  %v1037 = vadd.f32 %v972, %v1036
  %1038 = vmatmul.f32.gmra.mxu0 %v65
  %v1039 = vpop.f32.mrf.mxu0
  %v1040 = vadd.f32 %v975, %v1039
  %1041 = vmatmul.f32.gmra.mxu0 %v77
  %v1042 = vpop.f32.mrf.mxu0
  %v1043 = vadd.f32 %v978, %v1042
  %1044 = vmatmul.f32.gmra.mxu0 %v89
  %v1045 = vpop.f32.mrf.mxu0
  %v1046 = vadd.f32 %v981, %v1045
  %1047 = vmatmul.f32.gmra.mxu0 %v101
  %v1048 = vpop.f32.mrf.mxu0
  %v1049 = vadd.f32 %v984, %v1048
  %1050 = vmatmul.f32.gmra.mxu0 %v113
  %v1051 = vpop.f32.mrf.mxu0
  %v1052 = vadd.f32 %v987, %v1051
  %1053 = vmatmul.f32.gmra.mxu0 %v125
  %v1054 = vpop.f32.mrf.mxu0
  %v1055 = vadd.f32 %v990, %v1054
  %1056 = vmatmul.f32.gmra.mxu0 %v137
  %v1057 = vpop.f32.mrf.mxu0
  %v1058 = vadd.f32 %v993, %v1057
  %1059 = vmatmul.f32.gmra.mxu0 %v149
  %v1060 = vpop.f32.mrf.mxu0
  %v1061 = vadd.f32 %v996, %v1060
  %1062 = vmatmul.f32.gmra.mxu0 %v161
  %v1063 = vpop.f32.mrf.mxu0
  %v1064 = vadd.f32 %v999, %v1063
  %1065 = vmatmul.f32.gmra.mxu0 %v173
  %v1066 = vpop.f32.mrf.mxu0
  %v1067 = vadd.f32 %v1002, %v1066
  %1068 = vmatmul.f32.gmra.mxu0 %v185
  %v1069 = vpop.f32.mrf.mxu0
  %v1070 = vadd.f32 %v1005, %v1069
  %1071 = vmatmul.f32.gmra.mxu0 %v197
  %v1072 = vpop.f32.mrf.mxu0
  %v1073 = vadd.f32 %v1008, %v1072
  %1074 = vdwg.mxu0
  %1075 = vmatpush.msra.mxu0 %v514
  %1076 = vmatpush.msra.mxu0 %v513
  %1077 = vmatpush.msra.mxu0 %v512
  %1078 = vmatpush.msra.mxu0 %v511
  %1079 = vmatpush.msra.mxu0 %v510
  %1080 = vmatpush.msra.mxu0 %v509
  %1081 = vmatpush.msra.mxu0 %v508
  %1082 = vmatpush.msra.mxu0 %v507
  %1083 = vmatpush.msra.mxu0 %v506
  %1084 = vmatpush.msra.mxu0 %v505
  %1085 = vmatpush.msra.mxu0 %v504
  %1086 = vmatpush.msra.mxu0 %v503
  %1087 = vmatpush.msra.mxu0 %v502
  %1088 = vmatpush.msra.mxu0 %v501
  %1089 = vmatpush.msra.mxu0 %v500
  %1090 = vmatpush.msra.mxu0 %v499
  %1091 = vmatmul.f32.gmra.mxu0 %v18
  %v1092 = vpop.f32.mrf.mxu0
  %v1093 = vadd.f32 %v1028, %v1092
  %1094 = vmatmul.f32.gmra.mxu0 %v30
  %v1095 = vpop.f32.mrf.mxu0
  %v1096 = vadd.f32 %v1031, %v1095
  %1097 = vmatmul.f32.gmra.mxu0 %v42
  %v1098 = vpop.f32.mrf.mxu0
  %v1099 = vadd.f32 %v1034, %v1098
  %1100 = vmatmul.f32.gmra.mxu0 %v54
  %v1101 = vpop.f32.mrf.mxu0
  %v1102 = vadd.f32 %v1037, %v1101
  %1103 = vmatmul.f32.gmra.mxu0 %v66
  %v1104 = vpop.f32.mrf.mxu0
  %v1105 = vadd.f32 %v1040, %v1104
  %1106 = vmatmul.f32.gmra.mxu0 %v78
  %v1107 = vpop.f32.mrf.mxu0
  %v1108 = vadd.f32 %v1043, %v1107
  %1109 = vmatmul.f32.gmra.mxu0 %v90
  %v1110 = vpop.f32.mrf.mxu0
  %v1111 = vadd.f32 %v1046, %v1110
  %1112 = vmatmul.f32.gmra.mxu0 %v102
  %v1113 = vpop.f32.mrf.mxu0
  %v1114 = vadd.f32 %v1049, %v1113
  %1115 = vmatmul.f32.gmra.mxu0 %v114
  %v1116 = vpop.f32.mrf.mxu0
  %v1117 = vadd.f32 %v1052, %v1116
  %1118 = vmatmul.f32.gmra.mxu0 %v126
  %v1119 = vpop.f32.mrf.mxu0
  %v1120 = vadd.f32 %v1055, %v1119
  %1121 = vmatmul.f32.gmra.mxu0 %v138
  %v1122 = vpop.f32.mrf.mxu0
  %v1123 = vadd.f32 %v1058, %v1122
  %1124 = vmatmul.f32.gmra.mxu0 %v150
  %v1125 = vpop.f32.mrf.mxu0
  %v1126 = vadd.f32 %v1061, %v1125
  %1127 = vmatmul.f32.gmra.mxu0 %v162
  %v1128 = vpop.f32.mrf.mxu0
  %v1129 = vadd.f32 %v1064, %v1128
  %1130 = vmatmul.f32.gmra.mxu0 %v174
  %v1131 = vpop.f32.mrf.mxu0
  %v1132 = vadd.f32 %v1067, %v1131
  %1133 = vmatmul.f32.gmra.mxu0 %v186
  %v1134 = vpop.f32.mrf.mxu0
  %v1135 = vadd.f32 %v1070, %v1134
  %1136 = vmatmul.f32.gmra.mxu0 %v198
  %v1137 = vpop.f32.mrf.mxu0
  %v1138 = vadd.f32 %v1073, %v1137
  %1139 = vdwg.mxu0
  %1140 = vmatpush.msra.mxu0 %v530
  %1141 = vmatpush.msra.mxu0 %v529
  %1142 = vmatpush.msra.mxu0 %v528
  %1143 = vmatpush.msra.mxu0 %v527
  %1144 = vmatpush.msra.mxu0 %v526
  %1145 = vmatpush.msra.mxu0 %v525
  %1146 = vmatpush.msra.mxu0 %v524
  %1147 = vmatpush.msra.mxu0 %v523
  %1148 = vmatpush.msra.mxu0 %v522
  %1149 = vmatpush.msra.mxu0 %v521
  %1150 = vmatpush.msra.mxu0 %v520
  %1151 = vmatpush.msra.mxu0 %v519
  %1152 = vmatpush.msra.mxu0 %v518
  %1153 = vmatpush.msra.mxu0 %v517
  %1154 = vmatpush.msra.mxu0 %v516
  %1155 = vmatpush.msra.mxu0 %v515
  %1156 = vmatmul.f32.gmra.mxu0 %v19
  %v1157 = vpop.f32.mrf.mxu0
  %v1158 = vadd.f32 %v1093, %v1157
  %1159 = vmatmul.f32.gmra.mxu0 %v31
  %v1160 = vpop.f32.mrf.mxu0
  %v1161 = vadd.f32 %v1096, %v1160
  %1162 = vmatmul.f32.gmra.mxu0 %v43
  %v1163 = vpop.f32.mrf.mxu0
  %v1164 = vadd.f32 %v1099, %v1163
  %1165 = vmatmul.f32.gmra.mxu0 %v55
  %v1166 = vpop.f32.mrf.mxu0
  %v1167 = vadd.f32 %v1102, %v1166
  %1168 = vmatmul.f32.gmra.mxu0 %v67
  %v1169 = vpop.f32.mrf.mxu0
  %v1170 = vadd.f32 %v1105, %v1169
  %1171 = vmatmul.f32.gmra.mxu0 %v79
  %v1172 = vpop.f32.mrf.mxu0
  %v1173 = vadd.f32 %v1108, %v1172
  %1174 = vmatmul.f32.gmra.mxu0 %v91
  %v1175 = vpop.f32.mrf.mxu0
  %v1176 = vadd.f32 %v1111, %v1175
  %1177 = vmatmul.f32.gmra.mxu0 %v103
  %v1178 = vpop.f32.mrf.mxu0
  %v1179 = vadd.f32 %v1114, %v1178
  %1180 = vmatmul.f32.gmra.mxu0 %v115
  %v1181 = vpop.f32.mrf.mxu0
  %v1182 = vadd.f32 %v1117, %v1181
  %1183 = vmatmul.f32.gmra.mxu0 %v127
  %v1184 = vpop.f32.mrf.mxu0
  %v1185 = vadd.f32 %v1120, %v1184
  %1186 = vmatmul.f32.gmra.mxu0 %v139
  %v1187 = vpop.f32.mrf.mxu0
  %v1188 = vadd.f32 %v1123, %v1187
  %1189 = vmatmul.f32.gmra.mxu0 %v151
  %v1190 = vpop.f32.mrf.mxu0
  %v1191 = vadd.f32 %v1126, %v1190
  %1192 = vmatmul.f32.gmra.mxu0 %v163
  %v1193 = vpop.f32.mrf.mxu0
  %v1194 = vadd.f32 %v1129, %v1193
  %1195 = vmatmul.f32.gmra.mxu0 %v175
  %v1196 = vpop.f32.mrf.mxu0
  %v1197 = vadd.f32 %v1132, %v1196
  %1198 = vmatmul.f32.gmra.mxu0 %v187
  %v1199 = vpop.f32.mrf.mxu0
  %v1200 = vadd.f32 %v1135, %v1199
  %1201 = vmatmul.f32.gmra.mxu0 %v199
  %v1202 = vpop.f32.mrf.mxu0
  %v1203 = vadd.f32 %v1138, %v1202
  %1204 = vdwg.mxu0
  %1205 = vmatpush.msra.mxu0 %v546
  %1206 = vmatpush.msra.mxu0 %v545
  %1207 = vmatpush.msra.mxu0 %v544
  %1208 = vmatpush.msra.mxu0 %v543
  %1209 = vmatpush.msra.mxu0 %v542
  %1210 = vmatpush.msra.mxu0 %v541
  %1211 = vmatpush.msra.mxu0 %v540
  %1212 = vmatpush.msra.mxu0 %v539
  %1213 = vmatpush.msra.mxu0 %v538
  %1214 = vmatpush.msra.mxu0 %v537
  %1215 = vmatpush.msra.mxu0 %v536
  %1216 = vmatpush.msra.mxu0 %v535
  %1217 = vmatpush.msra.mxu0 %v534
  %1218 = vmatpush.msra.mxu0 %v533
  %1219 = vmatpush.msra.mxu0 %v532
  %1220 = vmatpush.msra.mxu0 %v531
  %1221 = vmatmul.f32.gmra.mxu0 %v20
  %v1222 = vpop.f32.mrf.mxu0
  %v1223 = vadd.f32 %v1158, %v1222
  %1224 = vmatmul.f32.gmra.mxu0 %v32
  %v1225 = vpop.f32.mrf.mxu0
  %v1226 = vadd.f32 %v1161, %v1225
  %1227 = vmatmul.f32.gmra.mxu0 %v44
  %v1228 = vpop.f32.mrf.mxu0
  %v1229 = vadd.f32 %v1164, %v1228
  %1230 = vmatmul.f32.gmra.mxu0 %v56
  %v1231 = vpop.f32.mrf.mxu0
  %v1232 = vadd.f32 %v1167, %v1231
  %1233 = vmatmul.f32.gmra.mxu0 %v68
  %v1234 = vpop.f32.mrf.mxu0
  %v1235 = vadd.f32 %v1170, %v1234
  %1236 = vmatmul.f32.gmra.mxu0 %v80
  %v1237 = vpop.f32.mrf.mxu0
  %v1238 = vadd.f32 %v1173, %v1237
  %1239 = vmatmul.f32.gmra.mxu0 %v92
  %v1240 = vpop.f32.mrf.mxu0
  %v1241 = vadd.f32 %v1176, %v1240
  %1242 = vmatmul.f32.gmra.mxu0 %v104
  %v1243 = vpop.f32.mrf.mxu0
  %v1244 = vadd.f32 %v1179, %v1243
  %1245 = vmatmul.f32.gmra.mxu0 %v116
  %v1246 = vpop.f32.mrf.mxu0
  %v1247 = vadd.f32 %v1182, %v1246
  %1248 = vmatmul.f32.gmra.mxu0 %v128
  %v1249 = vpop.f32.mrf.mxu0
  %v1250 = vadd.f32 %v1185, %v1249
  %1251 = vmatmul.f32.gmra.mxu0 %v140
  %v1252 = vpop.f32.mrf.mxu0
  %v1253 = vadd.f32 %v1188, %v1252
  %1254 = vmatmul.f32.gmra.mxu0 %v152
  %v1255 = vpop.f32.mrf.mxu0
  %v1256 = vadd.f32 %v1191, %v1255
  %1257 = vmatmul.f32.gmra.mxu0 %v164
  %v1258 = vpop.f32.mrf.mxu0
  %v1259 = vadd.f32 %v1194, %v1258
  %1260 = vmatmul.f32.gmra.mxu0 %v176
  %v1261 = vpop.f32.mrf.mxu0
  %v1262 = vadd.f32 %v1197, %v1261
  %1263 = vmatmul.f32.gmra.mxu0 %v188
  %v1264 = vpop.f32.mrf.mxu0
  %v1265 = vadd.f32 %v1200, %v1264
  %1266 = vmatmul.f32.gmra.mxu0 %v200
  %v1267 = vpop.f32.mrf.mxu0
  %v1268 = vadd.f32 %v1203, %v1267
  %1269 = vdwg.mxu0
  %1270 = vmatpush.msra.mxu0 %v562
  %1271 = vmatpush.msra.mxu0 %v561
  %1272 = vmatpush.msra.mxu0 %v560
  %1273 = vmatpush.msra.mxu0 %v559
  %1274 = vmatpush.msra.mxu0 %v558
  %1275 = vmatpush.msra.mxu0 %v557
  %1276 = vmatpush.msra.mxu0 %v556
  %1277 = vmatpush.msra.mxu0 %v555
  %1278 = vmatpush.msra.mxu0 %v554
  %1279 = vmatpush.msra.mxu0 %v553
  %1280 = vmatpush.msra.mxu0 %v552
  %1281 = vmatpush.msra.mxu0 %v551
  %1282 = vmatpush.msra.mxu0 %v550
  %1283 = vmatpush.msra.mxu0 %v549
  %1284 = vmatpush.msra.mxu0 %v548
  %1285 = vmatpush.msra.mxu0 %v547
  %1286 = vmatmul.f32.gmra.mxu0 %v21
  %v1287 = vpop.f32.mrf.mxu0
  %v1288 = vadd.f32 %v1223, %v1287
  %1289 = vmatmul.f32.gmra.mxu0 %v33
  %v1290 = vpop.f32.mrf.mxu0
  %v1291 = vadd.f32 %v1226, %v1290
  %1292 = vmatmul.f32.gmra.mxu0 %v45
  %v1293 = vpop.f32.mrf.mxu0
  %v1294 = vadd.f32 %v1229, %v1293
  %1295 = vmatmul.f32.gmra.mxu0 %v57
  %v1296 = vpop.f32.mrf.mxu0
  %v1297 = vadd.f32 %v1232, %v1296
  %1298 = vmatmul.f32.gmra.mxu0 %v69
  %v1299 = vpop.f32.mrf.mxu0
  %v1300 = vadd.f32 %v1235, %v1299
  %1301 = vmatmul.f32.gmra.mxu0 %v81
  %v1302 = vpop.f32.mrf.mxu0
  %v1303 = vadd.f32 %v1238, %v1302
  %1304 = vmatmul.f32.gmra.mxu0 %v93
  %v1305 = vpop.f32.mrf.mxu0
  %v1306 = vadd.f32 %v1241, %v1305
  %1307 = vmatmul.f32.gmra.mxu0 %v105
  %v1308 = vpop.f32.mrf.mxu0
  %v1309 = vadd.f32 %v1244, %v1308
  %1310 = vmatmul.f32.gmra.mxu0 %v117
  %v1311 = vpop.f32.mrf.mxu0
  %v1312 = vadd.f32 %v1247, %v1311
  %1313 = vmatmul.f32.gmra.mxu0 %v129
  %v1314 = vpop.f32.mrf.mxu0
  %v1315 = vadd.f32 %v1250, %v1314
  %1316 = vmatmul.f32.gmra.mxu0 %v141
  %v1317 = vpop.f32.mrf.mxu0
  %v1318 = vadd.f32 %v1253, %v1317
  %1319 = vmatmul.f32.gmra.mxu0 %v153
  %v1320 = vpop.f32.mrf.mxu0
  %v1321 = vadd.f32 %v1256, %v1320
  %1322 = vmatmul.f32.gmra.mxu0 %v165
  %v1323 = vpop.f32.mrf.mxu0
  %v1324 = vadd.f32 %v1259, %v1323
  %1325 = vmatmul.f32.gmra.mxu0 %v177
  %v1326 = vpop.f32.mrf.mxu0
  %v1327 = vadd.f32 %v1262, %v1326
  %1328 = vmatmul.f32.gmra.mxu0 %v189
  %v1329 = vpop.f32.mrf.mxu0
  %v1330 = vadd.f32 %v1265, %v1329
  %1331 = vmatmul.f32.gmra.mxu0 %v201
  %v1332 = vpop.f32.mrf.mxu0
  %v1333 = vadd.f32 %v1268, %v1332
  %1334 = vdwg.mxu0
  %1335 = vmatpush.msra.mxu0 0.0
  %1336 = vmatpush.msra.mxu0 0.0
  %1337 = vmatpush.msra.mxu0 0.0
  %1338 = vmatpush.msra.mxu0 0.0
  %1339 = vmatpush.msra.mxu0 0.0
  %1340 = vmatpush.msra.mxu0 0.0
  %1341 = vmatpush.msra.mxu0 0.0
  %1342 = vmatpush.msra.mxu0 0.0
  %1343 = vmatpush.msra.mxu0 %v570
  %1344 = vmatpush.msra.mxu0 %v569
  %1345 = vmatpush.msra.mxu0 %v568
  %1346 = vmatpush.msra.mxu0 %v567
  %1347 = vmatpush.msra.mxu0 %v566
  %1348 = vmatpush.msra.mxu0 %v565
  %1349 = vmatpush.msra.mxu0 %v564
  %1350 = vmatpush.msra.mxu0 %v563
  %1351 = vmatmul.f32.gmra.mxu0 %v573
  %v1352 = vpop.f32.mrf.mxu0
  %v1353 = vadd.f32 %v1288, %v1352
  %1354 = vmatmul.f32.gmra.mxu0 %v576
  %v1355 = vpop.f32.mrf.mxu0
  %v1356 = vadd.f32 %v1291, %v1355
  %1357 = vmatmul.f32.gmra.mxu0 %v579
  %v1358 = vpop.f32.mrf.mxu0
  %v1359 = vadd.f32 %v1294, %v1358
  %1360 = vmatmul.f32.gmra.mxu0 %v582
  %v1361 = vpop.f32.mrf.mxu0
  %v1362 = vadd.f32 %v1297, %v1361
  %1363 = vmatmul.f32.gmra.mxu0 %v585
  %v1364 = vpop.f32.mrf.mxu0
  %v1365 = vadd.f32 %v1300, %v1364
  %1366 = vmatmul.f32.gmra.mxu0 %v588
  %v1367 = vpop.f32.mrf.mxu0
  %v1368 = vadd.f32 %v1303, %v1367
  %1369 = vmatmul.f32.gmra.mxu0 %v591
  %v1370 = vpop.f32.mrf.mxu0
  %v1371 = vadd.f32 %v1306, %v1370
  %1372 = vmatmul.f32.gmra.mxu0 %v594
  %v1373 = vpop.f32.mrf.mxu0
  %v1374 = vadd.f32 %v1309, %v1373
  %1375 = vmatmul.f32.gmra.mxu0 %v597
  %v1376 = vpop.f32.mrf.mxu0
  %v1377 = vadd.f32 %v1312, %v1376
  %1378 = vmatmul.f32.gmra.mxu0 %v600
  %v1379 = vpop.f32.mrf.mxu0
  %v1380 = vadd.f32 %v1315, %v1379
  %1381 = vmatmul.f32.gmra.mxu0 %v603
  %v1382 = vpop.f32.mrf.mxu0
  %v1383 = vadd.f32 %v1318, %v1382
  %1384 = vmatmul.f32.gmra.mxu0 %v606
  %v1385 = vpop.f32.mrf.mxu0
  %v1386 = vadd.f32 %v1321, %v1385
  %1387 = vmatmul.f32.gmra.mxu0 %v609
  %v1388 = vpop.f32.mrf.mxu0
  %v1389 = vadd.f32 %v1324, %v1388
  %1390 = vmatmul.f32.gmra.mxu0 %v612
  %v1391 = vpop.f32.mrf.mxu0
  %v1392 = vadd.f32 %v1327, %v1391
  %1393 = vmatmul.f32.gmra.mxu0 %v615
  %v1394 = vpop.f32.mrf.mxu0
  %v1395 = vadd.f32 %v1330, %v1394
  %1396 = vmatmul.f32.gmra.mxu0 %v618
  %v1397 = vpop.f32.mrf.mxu0
  %v1398 = vadd.f32 %v1333, %v1397
  %1399 = vdwg.mxu0
  %vm1400 = vcmask 400384
  %1401 = vst.msk [vmem:[%s2] sm:$0xff] %vm1400, %v1353
  %1402 = vst.msk [vmem:[%s2 + $0x8] sm:$0xff] %vm1400, %v1356
  %1403 = vst.msk [vmem:[%s2 + $0x10] sm:$0xff] %vm1400, %v1359
  %1404 = vst.msk [vmem:[%s2 + $0x18] sm:$0xff] %vm1400, %v1362
  %1405 = vst.msk [vmem:[%s2 + $0x20] sm:$0xff] %vm1400, %v1365
  %1406 = vst.msk [vmem:[%s2 + $0x28] sm:$0xff] %vm1400, %v1368
  %1407 = vst.msk [vmem:[%s2 + $0x30] sm:$0xff] %vm1400, %v1371
  %1408 = vst.msk [vmem:[%s2 + $0x38] sm:$0xff] %vm1400, %v1374
  %1409 = vst.msk [vmem:[%s2 + $0x40] sm:$0xff] %vm1400, %v1377
  %1410 = vst.msk [vmem:[%s2 + $0x48] sm:$0xff] %vm1400, %v1380
  %1411 = vst.msk [vmem:[%s2 + $0x50] sm:$0xff] %vm1400, %v1383
  %1412 = vst.msk [vmem:[%s2 + $0x58] sm:$0xff] %vm1400, %v1386
  %1413 = vst.msk [vmem:[%s2 + $0x60] sm:$0xff] %vm1400, %v1389
  %1414 = vst.msk [vmem:[%s2 + $0x68] sm:$0xff] %vm1400, %v1392
  %1415 = vst.msk [vmem:[%s2 + $0x70] sm:$0xff] %vm1400, %v1395
  %1416 = vst.msk [vmem:[%s2 + $0x78] sm:$0xff] %vm1400, %v1398
  // Predicated region
  $region10: #{tpu_custom_call.1} parent=0 // pred_check
    _
  $region11: #{tpu_custom_call.1} parent=0 // pred_check_branch
    %1418 = sbr.rel (0) target = $region13
  $region12: #{tpu_custom_call.1} parent=0 // pred_region
    _
  $region13: #{tpu_custom_call.1} parent=0 // pred_fallthru
    _
  // Predicated region
  $region14: #{tpu_custom_call.1} parent=0 // pred_check
    _
  $region15: #{tpu_custom_call.1} parent=0 // pred_check_branch
    %1420 = sbr.rel (0) target = $region17
  $region16: #{tpu_custom_call.1} parent=0 // pred_region
    _
  $region17: #{tpu_custom_call.1} parent=0 // pred_fallthru
    _

</llo_original>
